<compile_context>
chip_gen: v7x
topology: tpu7x:2x2x1
jax: 0.10.0
libtpu: 0.0.40
codegen_flags: <defaults>
</compile_context>

<pallas_src>
import functools

import numpy as np
import jax
import jax.numpy as jnp
from jax.experimental import pallas as pl
from jax.experimental.pallas import tpu as pltpu


# ----------------------------- Pallas kernel -------------------------------- #
def _context_mlp_kernel(obs_ref, act_ref, rew_ref, nobs_ref, done_ref,
                        w1o_ref, w1a_ref, w1r_ref, w1n_ref, w1d_ref, b1_ref,
                        w2_ref, b2_ref, w3_ref, b3_ref,
                        out_ref, acc_ref, *, inv_t):
    t = pl.program_id(0)

    @pl.when(t == 0)
    def _():
        acc_ref[...] = jnp.zeros_like(acc_ref)

    obs = obs_ref[0]      # (B, d_obs)
    act = act_ref[0]      # (B, d_act)
    rew = rew_ref[0]      # (B, 1)
    nobs = nobs_ref[0]    # (B, d_obs)
    done = done_ref[0]    # (B, 1)

    # Layer 1 == concat([obs, act, rew, nobs, done]) @ W1 + b1, computed as a
    # sum of per-segment matmuls (MXU) plus rank-1 segments on the VPU, so the
    # concatenated context never exists in HBM or VMEM.
    h = (jnp.dot(obs, w1o_ref[...], preferred_element_type=jnp.float32)
         + jnp.dot(act, w1a_ref[...], preferred_element_type=jnp.float32)
         + jnp.dot(nobs, w1n_ref[...], preferred_element_type=jnp.float32)
         + rew * w1r_ref[...]          # (B,1) * (1,H) broadcast == rew @ W1_rew
         + done * w1d_ref[...]         # (B,1) * (1,H) broadcast == done @ W1_done
         + b1_ref[...])
    h = jnp.maximum(h, 0.0)
    h = jnp.maximum(
        jnp.dot(h, w2_ref[...], preferred_element_type=jnp.float32) + b2_ref[...],
        0.0)
    p = jnp.dot(h, w3_ref[...], preferred_element_type=jnp.float32) + b3_ref[...]

    # Running sum over T (mean applied at the final grid step).
    acc_ref[...] += p

    @pl.when(t == pl.num_programs(0) - 1)
    def _():
        out_ref[...] = acc_ref[...] * inv_t


# ------------------------------- wrapper ------------------------------------ #
@jax.jit
def context_infer_forward(params, observation, action, reward, next_observation, done):
    """params: dict of (w1,b1,w2,b2,w3,b3). Returns (B, output_size)."""
    T, B = observation.shape[0], observation.shape[1]

    obs_f = observation.reshape(T, B, -1).astype(jnp.float32)
    act_f = action.reshape(T, B, -1).astype(jnp.float32)
    rew_f = reward.reshape(T, B, 1).astype(jnp.float32)
    nobs_f = next_observation.reshape(T, B, -1).astype(jnp.float32)
    done_f = done.reshape(T, B, 1).astype(jnp.float32)

    d_obs = obs_f.shape[-1]
    d_act = act_f.shape[-1]

    w1, b1, w2, b2, w3, b3 = (params[k] for k in ("w1", "b1", "w2", "b2", "w3", "b3"))
    out_size = w3.shape[1]

    # Static row-split of W1 matching the concat layout [obs, act, rew, nobs, done].
    o0 = d_obs
    o1 = d_obs + d_act
    o2 = d_obs + d_act + 1
    o3 = 2 * d_obs + d_act + 1
    w1o, w1a, w1r, w1n, w1d = w1[:o0], w1[o0:o1], w1[o1:o2], w1[o2:o3], w1[o3:]

    kernel = functools.partial(_context_mlp_kernel, inv_t=float(1.0 / T))

    def whole(arr):
        # Full array resident in VMEM, same block every grid step.
        return pl.BlockSpec(arr.shape, lambda t: (0, 0))

    in_specs = [
        pl.BlockSpec((1, B, d_obs), lambda t: (t, 0, 0)),
        pl.BlockSpec((1, B, d_act), lambda t: (t, 0, 0)),
        pl.BlockSpec((1, B, 1), lambda t: (t, 0, 0)),
        pl.BlockSpec((1, B, d_obs), lambda t: (t, 0, 0)),
        pl.BlockSpec((1, B, 1), lambda t: (t, 0, 0)),
        whole(w1o), whole(w1a), whole(w1r), whole(w1n), whole(w1d), whole(b1),
        whole(w2), whole(b2), whole(w3), whole(b3),
    ]

    out = pl.pallas_call(
        kernel,
        out_shape=jax.ShapeDtypeStruct((B, out_size), jnp.float32),
        grid=(T,),
        in_specs=in_specs,
        out_specs=pl.BlockSpec((B, out_size), lambda t: (0, 0)),
        scratch_shapes=[pltpu.VMEM((B, out_size), jnp.float32)],
        compiler_params=pltpu.CompilerParams(
            dimension_semantics=("arbitrary",)),
    )(obs_f, act_f, rew_f, nobs_f, done_f,
      w1o, w1a, w1r, w1n, w1d, b1, w2, b2, w3, b3)
    return out


# --------------------------- parameter construction ------------------------- #
def init_params(key, input_size, hidden_sizes, output_size):
    """PyTorch nn.Linear default init: U(-1/sqrt(fan_in), 1/sqrt(fan_in)).
    Weights stored as (in, out) so the kernel computes x @ W + b."""
    sizes = [input_size] + list(hidden_sizes) + [output_size]
    params = {}
    for i in range(3):
        fan_in, fan_out = sizes[i], sizes[i + 1]
        key, kw, kb = jax.random.split(key, 3)
        bound = 1.0 / np.sqrt(fan_in)
        params[f"w{i+1}"] = jax.random.uniform(
            kw, (fan_in, fan_out), jnp.float32, -bound, bound)
        # biases kept 2D (1, fan_out) for TPU-friendly layout / broadcasting.
        params[f"b{i+1}"] = jax.random.uniform(
            kb, (1, fan_out), jnp.float32, -bound, bound)
    return params


# ------------------------------ reference (JAX) ------------------------------ #
def reference_forward(params, observation, action, reward, next_observation, done):
    T, B = observation.shape[0], observation.shape[1]
    TB = T * B
    x = jnp.concatenate([
        observation.reshape(TB, -1),
        action.reshape(TB, -1),
        reward.reshape(TB, -1),
        next_observation.reshape(TB, -1),
        done.reshape(TB, -1).astype(jnp.float32),
    ], axis=1).astype(jnp.float32)
    h = jnp.maximum(x @ params["w1"] + params["b1"], 0.0)
    h = jnp.maximum(h @ params["w2"] + params["b2"], 0.0)
    p = h @ params["w3"] + params["b3"]
    p = p.reshape(T, B, -1)
    return jnp.mean(p, axis=0)


# ---------------------------------- main ------------------------------------ #
if __name__ == "__main__":
    T, B = 8, 2
    obs_dim = 16            # observation_shape = (16,)  -> _obs_ndim = 1
    action_size = 4
    hidden_sizes = (32, 32)
    output_size = 8
    input_size = obs_dim * 2 + action_size + 1 + 1   # 38

    key = jax.random.PRNGKey(0)
    kp, k1, k2, k3, k4, k5 = jax.random.split(key, 6)

    params = init_params(kp, input_size, hidden_sizes, output_size)

    observation = jax.random.normal(k1, (T, B, obs_dim), jnp.float32)
    action = jax.random.normal(k2, (T, B, action_size), jnp.float32)
    reward = jax.random.normal(k3, (T, B), jnp.float32)
    next_observation = jax.random.normal(k4, (T, B, obs_dim), jnp.float32)
    done = (jax.random.uniform(k5, (T, B)) > 0.8).astype(jnp.float32)

    out = context_infer_forward(params, observation, action, reward,
                                next_observation, done)
    out = jax.block_until_ready(out)

    ref = reference_forward(params, observation, action, reward,
                            next_observation, done)
    assert out.shape == (B, output_size), out.shape
    assert np.allclose(np.asarray(out), np.asarray(ref), atol=1e-4, rtol=1e-4), (
        "mismatch vs reference")

    print("KERNEL_OK")
</pallas_src>

<mosaic_0001>
module attributes {stable_mosaic.version = 11 : i64} {
  func.func @_context_mlp_kernel(%arg0: i32, %arg1: memref<1x2x16xf32, #tpu.memory_space<vmem>>, %arg2: memref<1x2x4xf32, #tpu.memory_space<vmem>>, %arg3: memref<1x2x1xf32, #tpu.memory_space<vmem>>, %arg4: memref<1x2x16xf32, #tpu.memory_space<vmem>>, %arg5: memref<1x2x1xf32, #tpu.memory_space<vmem>>, %arg6: memref<16x32xf32, #tpu.memory_space<vmem>>, %arg7: memref<4x32xf32, #tpu.memory_space<vmem>>, %arg8: memref<1x32xf32, #tpu.memory_space<vmem>>, %arg9: memref<16x32xf32, #tpu.memory_space<vmem>>, %arg10: memref<1x32xf32, #tpu.memory_space<vmem>>, %arg11: memref<1x32xf32, #tpu.memory_space<vmem>>, %arg12: memref<32x32xf32, #tpu.memory_space<vmem>>, %arg13: memref<1x32xf32, #tpu.memory_space<vmem>>, %arg14: memref<32x8xf32, #tpu.memory_space<vmem>>, %arg15: memref<1x8xf32, #tpu.memory_space<vmem>>, %arg16: memref<2x8xf32, #tpu.memory_space<vmem>>, %arg17: memref<2x8xf32, #tpu.memory_space<vmem>>) attributes {dimension_semantics = [#tpu.dimension_semantics<arbitrary>], iteration_bounds = array<i64: 8>, scalar_prefetch = 0 : i64, scratch_operands = 1 : i64, tpu.core_type = #tpu.core_type<tc>, window_params = [{transform_indices = @transform_0, window_bounds = array<i64: 1, 2, 16>}, {transform_indices = @transform_1, window_bounds = array<i64: 1, 2, 4>}, {transform_indices = @transform_2, window_bounds = array<i64: 1, 2, 1>}, {transform_indices = @transform_3, window_bounds = array<i64: 1, 2, 16>}, {transform_indices = @transform_4, window_bounds = array<i64: 1, 2, 1>}, {pipeline_mode = #tpu.pipeline_mode<synchronous>, transform_indices = @transform_5, window_bounds = array<i64: 16, 32>}, {pipeline_mode = #tpu.pipeline_mode<synchronous>, transform_indices = @transform_6, window_bounds = array<i64: 4, 32>}, {pipeline_mode = #tpu.pipeline_mode<synchronous>, transform_indices = @transform_7, window_bounds = array<i64: 1, 32>}, {pipeline_mode = #tpu.pipeline_mode<synchronous>, transform_indices = @transform_8, window_bounds = array<i64: 16, 32>}, {pipeline_mode = #tpu.pipeline_mode<synchronous>, transform_indices = @transform_9, window_bounds = array<i64: 1, 32>}, {pipeline_mode = #tpu.pipeline_mode<synchronous>, transform_indices = @transform_10, window_bounds = array<i64: 1, 32>}, {pipeline_mode = #tpu.pipeline_mode<synchronous>, transform_indices = @transform_11, window_bounds = array<i64: 32, 32>}, {pipeline_mode = #tpu.pipeline_mode<synchronous>, transform_indices = @transform_12, window_bounds = array<i64: 1, 32>}, {pipeline_mode = #tpu.pipeline_mode<synchronous>, transform_indices = @transform_13, window_bounds = array<i64: 32, 8>}, {pipeline_mode = #tpu.pipeline_mode<synchronous>, transform_indices = @transform_14, window_bounds = array<i64: 1, 8>}, {pipeline_mode = #tpu.pipeline_mode<synchronous>, transform_indices = @transform_15, window_bounds = array<i64: 2, 8>}]} {
    %c0_i32 = arith.constant 0 : i32
    %0 = arith.cmpi eq, %arg0, %c0_i32 : i32
    %1 = arith.extui %0 : i1 to i32
    %c0_i32_0 = arith.constant 0 : i32
    %2 = arith.cmpi ne, %1, %c0_i32_0 : i32
    scf.if %2 {
      %cst_46 = arith.constant 0.000000e+00 : f32
      %54 = vector.broadcast %cst_46 : f32 to vector<2x8xf32>
      %c0_47 = arith.constant 0 : index
      %c0_48 = arith.constant 0 : index
      %55 = vector.load %arg17[%c0_47, %c0_48] : memref<2x8xf32, #tpu.memory_space<vmem>>, vector<2x8xf32>
      tpu.vector_store %arg17[%c0_47, %c0_48], %54 {strides = array<i32>} : memref<2x8xf32, #tpu.memory_space<vmem>>, vector<2x8xf32>,
    } else {
    }
    %c0 = arith.constant 0 : index
    %c0_1 = arith.constant 0 : index
    %c0_2 = arith.constant 0 : index
    %3 = vector.load %arg1[%c0, %c0_1, %c0_2] : memref<1x2x16xf32, #tpu.memory_space<vmem>>, vector<1x2x16xf32>
    %4 = vector.shape_cast %3 : vector<1x2x16xf32> to vector<2x16xf32>
    %c0_3 = arith.constant 0 : index
    %c0_4 = arith.constant 0 : index
    %c0_5 = arith.constant 0 : index
    %5 = vector.load %arg2[%c0_3, %c0_4, %c0_5] : memref<1x2x4xf32, #tpu.memory_space<vmem>>, vector<1x2x4xf32>
    %6 = vector.shape_cast %5 : vector<1x2x4xf32> to vector<2x4xf32>
    %c0_6 = arith.constant 0 : index
    %c0_7 = arith.constant 0 : index
    %c0_8 = arith.constant 0 : index
    %7 = vector.load %arg3[%c0_6, %c0_7, %c0_8] : memref<1x2x1xf32, #tpu.memory_space<vmem>>, vector<1x2x1xf32>
    %8 = vector.shape_cast %7 : vector<1x2x1xf32> to vector<2x1xf32>
    %c0_9 = arith.constant 0 : index
    %c0_10 = arith.constant 0 : index
    %c0_11 = arith.constant 0 : index
    %9 = vector.load %arg4[%c0_9, %c0_10, %c0_11] : memref<1x2x16xf32, #tpu.memory_space<vmem>>, vector<1x2x16xf32>
    %10 = vector.shape_cast %9 : vector<1x2x16xf32> to vector<2x16xf32>
    %c0_12 = arith.constant 0 : index
    %c0_13 = arith.constant 0 : index
    %c0_14 = arith.constant 0 : index
    %11 = vector.load %arg5[%c0_12, %c0_13, %c0_14] : memref<1x2x1xf32, #tpu.memory_space<vmem>>, vector<1x2x1xf32>
    %12 = vector.shape_cast %11 : vector<1x2x1xf32> to vector<2x1xf32>
    %c0_15 = arith.constant 0 : index
    %c0_16 = arith.constant 0 : index
    %13 = vector.load %arg6[%c0_15, %c0_16] : memref<16x32xf32, #tpu.memory_space<vmem>>, vector<16x32xf32>
    %cst = arith.constant dense<0.000000e+00> : vector<2x32xf32>
    %14 = tpu.matmul %4, %13, %cst {dimension_numbers = #tpu.dot_dimension_numbers<[1], [0], [0], [1], [0, 0, 1, 1], [], []>} : vector<2x16xf32>, vector<16x32xf32>, vector<2x32xf32> -> vector<2x32xf32>
    %c0_17 = arith.constant 0 : index
    %c0_18 = arith.constant 0 : index
    %15 = vector.load %arg7[%c0_17, %c0_18] : memref<4x32xf32, #tpu.memory_space<vmem>>, vector<4x32xf32>
    %cst_19 = arith.constant dense<0.000000e+00> : vector<2x32xf32>
    %16 = tpu.matmul %6, %15, %cst_19 {dimension_numbers = #tpu.dot_dimension_numbers<[1], [0], [0], [1], [0, 0, 1, 1], [], []>} : vector<2x4xf32>, vector<4x32xf32>, vector<2x32xf32> -> vector<2x32xf32>
    %17 = arith.addf %14, %16 : vector<2x32xf32>
    %c0_20 = arith.constant 0 : index
    %c0_21 = arith.constant 0 : index
    %18 = vector.load %arg9[%c0_20, %c0_21] : memref<16x32xf32, #tpu.memory_space<vmem>>, vector<16x32xf32>
    %cst_22 = arith.constant dense<0.000000e+00> : vector<2x32xf32>
    %19 = tpu.matmul %10, %18, %cst_22 {dimension_numbers = #tpu.dot_dimension_numbers<[1], [0], [0], [1], [0, 0, 1, 1], [], []>} : vector<2x16xf32>, vector<16x32xf32>, vector<2x32xf32> -> vector<2x32xf32>
    %20 = arith.addf %17, %19 : vector<2x32xf32>
    %c0_23 = arith.constant 0 : index
    %c0_24 = arith.constant 0 : index
    %21 = vector.load %arg8[%c0_23, %c0_24] : memref<1x32xf32, #tpu.memory_space<vmem>>, vector<1x32xf32>
    %22 = vector.broadcast %8 : vector<2x1xf32> to vector<2x32xf32>
    %23 = vector.broadcast %21 : vector<1x32xf32> to vector<2x32xf32>
    %24 = arith.mulf %22, %23 : vector<2x32xf32>
    %25 = arith.addf %20, %24 : vector<2x32xf32>
    %c0_25 = arith.constant 0 : index
    %c0_26 = arith.constant 0 : index
    %26 = vector.load %arg10[%c0_25, %c0_26] : memref<1x32xf32, #tpu.memory_space<vmem>>, vector<1x32xf32>
    %27 = vector.broadcast %12 : vector<2x1xf32> to vector<2x32xf32>
    %28 = vector.broadcast %26 : vector<1x32xf32> to vector<2x32xf32>
    %29 = arith.mulf %27, %28 : vector<2x32xf32>
    %30 = arith.addf %25, %29 : vector<2x32xf32>
    %c0_27 = arith.constant 0 : index
    %c0_28 = arith.constant 0 : index
    %31 = vector.load %arg11[%c0_27, %c0_28] : memref<1x32xf32, #tpu.memory_space<vmem>>, vector<1x32xf32>
    %32 = vector.broadcast %31 : vector<1x32xf32> to vector<2x32xf32>
    %33 = arith.addf %30, %32 : vector<2x32xf32>
    %cst_29 = arith.constant 0.000000e+00 : f32
    %34 = vector.broadcast %cst_29 : f32 to vector<2x32xf32>
    %35 = arith.maximumf %33, %34 : vector<2x32xf32>
    %c0_30 = arith.constant 0 : index
    %c0_31 = arith.constant 0 : index
    %36 = vector.load %arg12[%c0_30, %c0_31] : memref<32x32xf32, #tpu.memory_space<vmem>>, vector<32x32xf32>
    %cst_32 = arith.constant dense<0.000000e+00> : vector<2x32xf32>
    %37 = tpu.matmul %35, %36, %cst_32 {dimension_numbers = #tpu.dot_dimension_numbers<[1], [0], [0], [1], [0, 0, 1, 1], [], []>} : vector<2x32xf32>, vector<32x32xf32>, vector<2x32xf32> -> vector<2x32xf32>
    %c0_33 = arith.constant 0 : index
    %c0_34 = arith.constant 0 : index
    %38 = vector.load %arg13[%c0_33, %c0_34] : memref<1x32xf32, #tpu.memory_space<vmem>>, vector<1x32xf32>
    %39 = vector.broadcast %38 : vector<1x32xf32> to vector<2x32xf32>
    %40 = arith.addf %37, %39 : vector<2x32xf32>
    %cst_35 = arith.constant 0.000000e+00 : f32
    %41 = vector.broadcast %cst_35 : f32 to vector<2x32xf32>
    %42 = arith.maximumf %40, %41 : vector<2x32xf32>
    %c0_36 = arith.constant 0 : index
    %c0_37 = arith.constant 0 : index
    %43 = vector.load %arg14[%c0_36, %c0_37] : memref<32x8xf32, #tpu.memory_space<vmem>>, vector<32x8xf32>
    %cst_38 = arith.constant dense<0.000000e+00> : vector<2x8xf32>
    %44 = tpu.matmul %42, %43, %cst_38 {dimension_numbers = #tpu.dot_dimension_numbers<[1], [0], [0], [1], [0, 0, 1, 1], [], []>} : vector<2x32xf32>, vector<32x8xf32>, vector<2x8xf32> -> vector<2x8xf32>
    %c0_39 = arith.constant 0 : index
    %c0_40 = arith.constant 0 : index
    %45 = vector.load %arg15[%c0_39, %c0_40] : memref<1x8xf32, #tpu.memory_space<vmem>>, vector<1x8xf32>
    %46 = vector.broadcast %45 : vector<1x8xf32> to vector<2x8xf32>
    %47 = arith.addf %44, %46 : vector<2x8xf32>
    %c0_41 = arith.constant 0 : index
    %c0_42 = arith.constant 0 : index
    %48 = vector.load %arg17[%c0_41, %c0_42] : memref<2x8xf32, #tpu.memory_space<vmem>>, vector<2x8xf32>
    %49 = arith.addf %48, %47 : vector<2x8xf32>
    %c0_43 = arith.constant 0 : index
    %c0_44 = arith.constant 0 : index
    %50 = vector.load %arg17[%c0_43, %c0_44] : memref<2x8xf32, #tpu.memory_space<vmem>>, vector<2x8xf32>
    tpu.vector_store %arg17[%c0_43, %c0_44], %49 {strides = array<i32>} : memref<2x8xf32, #tpu.memory_space<vmem>>, vector<2x8xf32>,
    %c7_i32 = arith.constant 7 : i32
    %51 = arith.cmpi eq, %arg0, %c7_i32 : i32
    %52 = arith.extui %51 : i1 to i32
    %c0_i32_45 = arith.constant 0 : i32
    %53 = arith.cmpi ne, %52, %c0_i32_45 : i32
    scf.if %53 {
      %c0_46 = arith.constant 0 : index
      %c0_47 = arith.constant 0 : index
      %54 = vector.load %arg17[%c0_46, %c0_47] : memref<2x8xf32, #tpu.memory_space<vmem>>, vector<2x8xf32>
      %cst_48 = arith.constant 1.250000e-01 : f32
      %55 = vector.broadcast %cst_48 : f32 to vector<2x8xf32>
      %56 = arith.mulf %54, %55 : vector<2x8xf32>
      %c0_49 = arith.constant 0 : index
      %c0_50 = arith.constant 0 : index
      %57 = vector.load %arg16[%c0_49, %c0_50] : memref<2x8xf32, #tpu.memory_space<vmem>>, vector<2x8xf32>
      tpu.vector_store %arg16[%c0_49, %c0_50], %56 {strides = array<i32>} : memref<2x8xf32, #tpu.memory_space<vmem>>, vector<2x8xf32>,
    } else {
    }
    return
  }
  func.func @transform_0(%arg0: i32) -> (i32, i32, i32) {
    %c0_i32 = arith.constant 0 : i32
    %c0_i32_0 = arith.constant 0 : i32
    %c0_i32_1 = arith.constant 0 : i32
    return %arg0, %c0_i32, %c0_i32_0 : i32, i32, i32
  }
  func.func @transform_1(%arg0: i32) -> (i32, i32, i32) {
    %c0_i32 = arith.constant 0 : i32
    %c0_i32_0 = arith.constant 0 : i32
    %c0_i32_1 = arith.constant 0 : i32
    return %arg0, %c0_i32, %c0_i32_0 : i32, i32, i32
  }
  func.func @transform_2(%arg0: i32) -> (i32, i32, i32) {
    %c0_i32 = arith.constant 0 : i32
    %c0_i32_0 = arith.constant 0 : i32
    %c0_i32_1 = arith.constant 0 : i32
    return %arg0, %c0_i32, %c0_i32_0 : i32, i32, i32
  }
  func.func @transform_3(%arg0: i32) -> (i32, i32, i32) {
    %c0_i32 = arith.constant 0 : i32
    %c0_i32_0 = arith.constant 0 : i32
    %c0_i32_1 = arith.constant 0 : i32
    return %arg0, %c0_i32, %c0_i32_0 : i32, i32, i32
  }
  func.func @transform_4(%arg0: i32) -> (i32, i32, i32) {
    %c0_i32 = arith.constant 0 : i32
    %c0_i32_0 = arith.constant 0 : i32
    %c0_i32_1 = arith.constant 0 : i32
    return %arg0, %c0_i32, %c0_i32_0 : i32, i32, i32
  }
  func.func @transform_5(%arg0: i32) -> (i32, i32) {
    %c0_i32 = arith.constant 0 : i32
    %c0_i32_0 = arith.constant 0 : i32
    %c0_i32_1 = arith.constant 0 : i32
    return %c0_i32, %c0_i32_0 : i32, i32
  }
  func.func @transform_6(%arg0: i32) -> (i32, i32) {
    %c0_i32 = arith.constant 0 : i32
    %c0_i32_0 = arith.constant 0 : i32
    %c0_i32_1 = arith.constant 0 : i32
    return %c0_i32, %c0_i32_0 : i32, i32
  }
  func.func @transform_7(%arg0: i32) -> (i32, i32) {
    %c0_i32 = arith.constant 0 : i32
    %c0_i32_0 = arith.constant 0 : i32
    %c0_i32_1 = arith.constant 0 : i32
    return %c0_i32, %c0_i32_0 : i32, i32
  }
  func.func @transform_8(%arg0: i32) -> (i32, i32) {
    %c0_i32 = arith.constant 0 : i32
    %c0_i32_0 = arith.constant 0 : i32
    %c0_i32_1 = arith.constant 0 : i32
    return %c0_i32, %c0_i32_0 : i32, i32
  }
  func.func @transform_9(%arg0: i32) -> (i32, i32) {
    %c0_i32 = arith.constant 0 : i32
    %c0_i32_0 = arith.constant 0 : i32
    %c0_i32_1 = arith.constant 0 : i32
    return %c0_i32, %c0_i32_0 : i32, i32
  }
  func.func @transform_10(%arg0: i32) -> (i32, i32) {
    %c0_i32 = arith.constant 0 : i32
    %c0_i32_0 = arith.constant 0 : i32
    %c0_i32_1 = arith.constant 0 : i32
    return %c0_i32, %c0_i32_0 : i32, i32
  }
  func.func @transform_11(%arg0: i32) -> (i32, i32) {
    %c0_i32 = arith.constant 0 : i32
    %c0_i32_0 = arith.constant 0 : i32
    %c0_i32_1 = arith.constant 0 : i32
    return %c0_i32, %c0_i32_0 : i32, i32
  }
  func.func @transform_12(%arg0: i32) -> (i32, i32) {
    %c0_i32 = arith.constant 0 : i32
    %c0_i32_0 = arith.constant 0 : i32
    %c0_i32_1 = arith.constant 0 : i32
    return %c0_i32, %c0_i32_0 : i32, i32
  }
  func.func @transform_13(%arg0: i32) -> (i32, i32) {
    %c0_i32 = arith.constant 0 : i32
    %c0_i32_0 = arith.constant 0 : i32
    %c0_i32_1 = arith.constant 0 : i32
    return %c0_i32, %c0_i32_0 : i32, i32
  }
  func.func @transform_14(%arg0: i32) -> (i32, i32) {
    %c0_i32 = arith.constant 0 : i32
    %c0_i32_0 = arith.constant 0 : i32
    %c0_i32_1 = arith.constant 0 : i32
    return %c0_i32, %c0_i32_0 : i32, i32
  }
  func.func @transform_15(%arg0: i32) -> (i32, i32) {
    %c0_i32 = arith.constant 0 : i32
    %c0_i32_0 = arith.constant 0 : i32
    %c0_i32_1 = arith.constant 0 : i32
    return %c0_i32, %c0_i32_0 : i32, i32
  }
}

</mosaic_0001>

<llo_original>
// kernel: context_infer_forward.1
$region0: #{context_infer_forward.1}
  #allocation0 [shape = 'u32[]', space=smem, size = 0x4, offset = 0x4, fixed_abs, tag = 'smem constant byte address 0x4 - core index']
  #allocation1 [shape = 'u32[144,128]{1,0:T(1,128)}', space=vmem, size = 0x12000, scoped, tag = 'internal scratch']
  #allocation2 [shape = 'f32[2,8]{1,0:T(2,128)}', space=vmem, size = 0x400, scoped, tag = 'scratch operand']
  %s0 = inlined_call_operand.vmem [shape: f32[8,2,16], index: 0, kind: input, shape index: {}]
  %s1 = inlined_call_operand.vmem [shape: f32[8,2,4], index: 1, kind: input, shape index: {}]
  %s2 = inlined_call_operand.vmem [shape: f32[8,2,1], index: 2, kind: input, shape index: {}]
  %s3 = inlined_call_operand.vmem [shape: f32[8,2,16], index: 3, kind: input, shape index: {}]
  %s4 = inlined_call_operand.vmem [shape: f32[8,2,1], index: 4, kind: input, shape index: {}]
  %s5 = inlined_call_operand.vmem [shape: f32[16,32], index: 5, kind: input, shape index: {}]
  %s6 = inlined_call_operand.vmem [shape: f32[4,32], index: 6, kind: input, shape index: {}]
  %s7 = inlined_call_operand.vmem [shape: f32[1,32], index: 7, kind: input, shape index: {}]
  %s8 = inlined_call_operand.vmem [shape: f32[16,32], index: 8, kind: input, shape index: {}]
  %s9 = inlined_call_operand.vmem [shape: f32[1,32], index: 9, kind: input, shape index: {}]
  %s10 = inlined_call_operand.vmem [shape: f32[1,32], index: 10, kind: input, shape index: {}]
  %s11 = inlined_call_operand.vmem [shape: f32[32,32], index: 11, kind: input, shape index: {}]
  %s12 = inlined_call_operand.vmem [shape: f32[1,32], index: 12, kind: input, shape index: {}]
  %s13 = inlined_call_operand.vmem [shape: f32[32,8], index: 13, kind: input, shape index: {}]
  %s14 = inlined_call_operand.vmem [shape: f32[1,8], index: 14, kind: input, shape index: {}]
  %s15 = inlined_call_operand.hbm [shape: f32[2,8], index: 15, kind: output, shape index: {}]
  %s16 = sld [smem:[#allocation0]]
  $region101: #{context_infer_forward.1} parent=0
    _
  %s18 = ssub.s32 1, %s16
  %s19 = scalar_select 0, %s18, %s16
  $region1: #{context_infer_forward.1} parent=0
    #allocation3 [shape = 'u8[1024]{0}', space=vmem, size = 0x400, scoped, tag = 'output window, operand 0, single buffered']
    #allocation4 [shape = 's32[2]{0}', space=sflag, size = 0x8, scoped, tag = 'scoped memory for context_infer_forward.1']
    %20 = vsyncpa [#allocation4], 0
    loop: start=0, step=1, limit=10
    $region2: #{context_infer_forward.1} parent=1 // loop_pre_header
      _
    $region3: #{context_infer_forward.1} parent=1 // loop_header
      %s22 = sphi 0, %s26
      %p23 = scmp.ge.s32.totalorder %s22, 10
      %s32 = sphi 0, %s34
      %s35 = sphi 0, %s32
      %s36 = sphi 0, %s35
      %s52 = sphi 0, %s36
      %s58 = sphi 0, %s60
      %s61 = sphi 0, %s58
      %s62 = sphi 0, %s61
      %s78 = sphi 0, %s62
      %s84 = sphi 0, %s86
      %s87 = sphi 0, %s84
      %s88 = sphi 0, %s87
      %s104 = sphi 0, %s88
      %s110 = sphi 0, %s112
      %s113 = sphi 0, %s110
      %s114 = sphi 0, %s113
      %s130 = sphi 0, %s114
      %s136 = sphi 0, %s138
      %s139 = sphi 0, %s136
      %s140 = sphi 0, %s139
      %s156 = sphi 0, %s140
      %s160 = sphi 0, %s160
      %s162 = sphi 0, %s160
      %s163 = sphi 0, %s162
      %s177 = sphi 0, %s163
      %s181 = sphi 0, %s181
      %s183 = sphi 0, %s181
      %s184 = sphi 0, %s183
      %s198 = sphi 0, %s184
      %s202 = sphi 0, %s202
      %s204 = sphi 0, %s202
      %s205 = sphi 0, %s204
      %s219 = sphi 0, %s205
      %s223 = sphi 0, %s223
      %s225 = sphi 0, %s223
      %s226 = sphi 0, %s225
      %s240 = sphi 0, %s226
      %s244 = sphi 0, %s244
      %s246 = sphi 0, %s244
      %s247 = sphi 0, %s246
      %s261 = sphi 0, %s247
      %s265 = sphi 0, %s265
      %s267 = sphi 0, %s265
      %s268 = sphi 0, %s267
      %s282 = sphi 0, %s268
      %s286 = sphi 0, %s286
      %s288 = sphi 0, %s286
      %s289 = sphi 0, %s288
      %s303 = sphi 0, %s289
      %s307 = sphi 0, %s307
      %s309 = sphi 0, %s307
      %s310 = sphi 0, %s309
      %s324 = sphi 0, %s310
      %s328 = sphi 0, %s328
      %s330 = sphi 0, %s328
      %s331 = sphi 0, %s330
      %s345 = sphi 0, %s331
      %s349 = sphi 0, %s349
      %s351 = sphi 0, %s349
      %s352 = sphi 0, %s351
      %s366 = sphi 0, %s352
      %s370 = sphi 0, %s370
      %s372 = sphi 0, %s370
      %s373 = sphi 0, %s372
      %s387 = sphi 0, %s373
    $region4: #{context_infer_forward.1} parent=1 // loop_header_branch
      %25 = sbr.rel (%p23) target = $region8
    $region5: #{context_infer_forward.1} parent=1 // loop_body
      %s27 = ssub.s32 %s22, 1
      %s28 = ssub.s32 %s22, 2
      %s29 = sadd.s32 %s22, 1
      %s30 = ssub.s32 %s22, %s29
      %p31 = scmp.eq.s32.totalorder %s30, 0
      %s33 = sadd.s32 %s32, 1
      %s34 = scalar_select %p31, %s32, %s33
      %p37 = pneg %p31
      %p38 = scmp.eq.s32.totalorder %s22, 7
      %p39 = por %p37, %p38
      %p40 = scmp.ne.s32.totalorder %s32, %s35
      %p41 = scmp.eq.s32.totalorder %s22, 0
      %p42 = por %p40, %p41
      %p43 = scmp.ne.s32.totalorder %s32, %s35
      %p44 = scmp.eq.s32.totalorder %s27, 7
      %p45 = por %p43, %p44
      %p46 = scmp.ne.s32.totalorder %s35, %s36
      %p47 = scmp.eq.s32.totalorder %s27, 0
      %p48 = por %p46, %p47
      %p49 = scmp.ne.s32.totalorder %s35, %s36
      %p50 = scmp.eq.s32.totalorder %s28, 7
      %p51 = por %p49, %p50
      %p53 = scmp.ne.s32.totalorder %s36, %s52
      %p54 = scmp.eq.s32.totalorder %s28, 0
      %p55 = por %p53, %p54
      %s56 = ssub.s32 %s22, %s29
      %p57 = scmp.eq.s32.totalorder %s56, 0
      %s59 = sadd.s32 %s58, 1
      %s60 = scalar_select %p57, %s58, %s59
      %p63 = pneg %p57
      %p64 = scmp.eq.s32.totalorder %s22, 7
      %p65 = por %p63, %p64
      %p66 = scmp.ne.s32.totalorder %s58, %s61
      %p67 = scmp.eq.s32.totalorder %s22, 0
      %p68 = por %p66, %p67
      %p69 = scmp.ne.s32.totalorder %s58, %s61
      %p70 = scmp.eq.s32.totalorder %s27, 7
      %p71 = por %p69, %p70
      %p72 = scmp.ne.s32.totalorder %s61, %s62
      %p73 = scmp.eq.s32.totalorder %s27, 0
      %p74 = por %p72, %p73
      %p75 = scmp.ne.s32.totalorder %s61, %s62
      %p76 = scmp.eq.s32.totalorder %s28, 7
      %p77 = por %p75, %p76
      %p79 = scmp.ne.s32.totalorder %s62, %s78
      %p80 = scmp.eq.s32.totalorder %s28, 0
      %p81 = por %p79, %p80
      %s82 = ssub.s32 %s22, %s29
      %p83 = scmp.eq.s32.totalorder %s82, 0
      %s85 = sadd.s32 %s84, 1
      %s86 = scalar_select %p83, %s84, %s85
      %p89 = pneg %p83
      %p90 = scmp.eq.s32.totalorder %s22, 7
      %p91 = por %p89, %p90
      %p92 = scmp.ne.s32.totalorder %s84, %s87
      %p93 = scmp.eq.s32.totalorder %s22, 0
      %p94 = por %p92, %p93
      %p95 = scmp.ne.s32.totalorder %s84, %s87
      %p96 = scmp.eq.s32.totalorder %s27, 7
      %p97 = por %p95, %p96
      %p98 = scmp.ne.s32.totalorder %s87, %s88
      %p99 = scmp.eq.s32.totalorder %s27, 0
      %p100 = por %p98, %p99
      %p101 = scmp.ne.s32.totalorder %s87, %s88
      %p102 = scmp.eq.s32.totalorder %s28, 7
      %p103 = por %p101, %p102
      %p105 = scmp.ne.s32.totalorder %s88, %s104
      %p106 = scmp.eq.s32.totalorder %s28, 0
      %p107 = por %p105, %p106
      %s108 = ssub.s32 %s22, %s29
      %p109 = scmp.eq.s32.totalorder %s108, 0
      %s111 = sadd.s32 %s110, 1
      %s112 = scalar_select %p109, %s110, %s111
      %p115 = pneg %p109
      %p116 = scmp.eq.s32.totalorder %s22, 7
      %p117 = por %p115, %p116
      %p118 = scmp.ne.s32.totalorder %s110, %s113
      %p119 = scmp.eq.s32.totalorder %s22, 0
      %p120 = por %p118, %p119
      %p121 = scmp.ne.s32.totalorder %s110, %s113
      %p122 = scmp.eq.s32.totalorder %s27, 7
      %p123 = por %p121, %p122
      %p124 = scmp.ne.s32.totalorder %s113, %s114
      %p125 = scmp.eq.s32.totalorder %s27, 0
      %p126 = por %p124, %p125
      %p127 = scmp.ne.s32.totalorder %s113, %s114
      %p128 = scmp.eq.s32.totalorder %s28, 7
      %p129 = por %p127, %p128
      %p131 = scmp.ne.s32.totalorder %s114, %s130
      %p132 = scmp.eq.s32.totalorder %s28, 0
      %p133 = por %p131, %p132
      %s134 = ssub.s32 %s22, %s29
      %p135 = scmp.eq.s32.totalorder %s134, 0
      %s137 = sadd.s32 %s136, 1
      %s138 = scalar_select %p135, %s136, %s137
      %p141 = pneg %p135
      %p142 = scmp.eq.s32.totalorder %s22, 7
      %p143 = por %p141, %p142
      %p144 = scmp.ne.s32.totalorder %s136, %s139
      %p145 = scmp.eq.s32.totalorder %s22, 0
      %p146 = por %p144, %p145
      %p147 = scmp.ne.s32.totalorder %s136, %s139
      %p148 = scmp.eq.s32.totalorder %s27, 7
      %p149 = por %p147, %p148
      %p150 = scmp.ne.s32.totalorder %s139, %s140
      %p151 = scmp.eq.s32.totalorder %s27, 0
      %p152 = por %p150, %p151
      %p153 = scmp.ne.s32.totalorder %s139, %s140
      %p154 = scmp.eq.s32.totalorder %s28, 7
      %p155 = por %p153, %p154
      %p157 = scmp.ne.s32.totalorder %s140, %s156
      %p158 = scmp.eq.s32.totalorder %s28, 0
      %p159 = por %p157, %p158
      %s161 = sadd.s32 %s160, 1
      %p164 = scmp.eq.s32.totalorder %s22, 7
      %p165 = scmp.ne.s32.totalorder %s160, %s162
      %p166 = scmp.eq.s32.totalorder %s22, 0
      %p167 = por %p165, %p166
      %p168 = scmp.ne.s32.totalorder %s160, %s162
      %p169 = scmp.eq.s32.totalorder %s27, 7
      %p170 = por %p168, %p169
      %p171 = scmp.ne.s32.totalorder %s162, %s163
      %p172 = scmp.eq.s32.totalorder %s27, 0
      %p173 = por %p171, %p172
      %p174 = scmp.ne.s32.totalorder %s162, %s163
      %p175 = scmp.eq.s32.totalorder %s28, 7
      %p176 = por %p174, %p175
      %p178 = scmp.ne.s32.totalorder %s163, %s177
      %p179 = scmp.eq.s32.totalorder %s28, 0
      %p180 = por %p178, %p179
      %s182 = sadd.s32 %s181, 1
      %p185 = scmp.eq.s32.totalorder %s22, 7
      %p186 = scmp.ne.s32.totalorder %s181, %s183
      %p187 = scmp.eq.s32.totalorder %s22, 0
      %p188 = por %p186, %p187
      %p189 = scmp.ne.s32.totalorder %s181, %s183
      %p190 = scmp.eq.s32.totalorder %s27, 7
      %p191 = por %p189, %p190
      %p192 = scmp.ne.s32.totalorder %s183, %s184
      %p193 = scmp.eq.s32.totalorder %s27, 0
      %p194 = por %p192, %p193
      %p195 = scmp.ne.s32.totalorder %s183, %s184
      %p196 = scmp.eq.s32.totalorder %s28, 7
      %p197 = por %p195, %p196
      %p199 = scmp.ne.s32.totalorder %s184, %s198
      %p200 = scmp.eq.s32.totalorder %s28, 0
      %p201 = por %p199, %p200
      %s203 = sadd.s32 %s202, 1
      %p206 = scmp.eq.s32.totalorder %s22, 7
      %p207 = scmp.ne.s32.totalorder %s202, %s204
      %p208 = scmp.eq.s32.totalorder %s22, 0
      %p209 = por %p207, %p208
      %p210 = scmp.ne.s32.totalorder %s202, %s204
      %p211 = scmp.eq.s32.totalorder %s27, 7
      %p212 = por %p210, %p211
      %p213 = scmp.ne.s32.totalorder %s204, %s205
      %p214 = scmp.eq.s32.totalorder %s27, 0
      %p215 = por %p213, %p214
      %p216 = scmp.ne.s32.totalorder %s204, %s205
      %p217 = scmp.eq.s32.totalorder %s28, 7
      %p218 = por %p216, %p217
      %p220 = scmp.ne.s32.totalorder %s205, %s219
      %p221 = scmp.eq.s32.totalorder %s28, 0
      %p222 = por %p220, %p221
      %s224 = sadd.s32 %s223, 1
      %p227 = scmp.eq.s32.totalorder %s22, 7
      %p228 = scmp.ne.s32.totalorder %s223, %s225
      %p229 = scmp.eq.s32.totalorder %s22, 0
      %p230 = por %p228, %p229
      %p231 = scmp.ne.s32.totalorder %s223, %s225
      %p232 = scmp.eq.s32.totalorder %s27, 7
      %p233 = por %p231, %p232
      %p234 = scmp.ne.s32.totalorder %s225, %s226
      %p235 = scmp.eq.s32.totalorder %s27, 0
      %p236 = por %p234, %p235
      %p237 = scmp.ne.s32.totalorder %s225, %s226
      %p238 = scmp.eq.s32.totalorder %s28, 7
      %p239 = por %p237, %p238
      %p241 = scmp.ne.s32.totalorder %s226, %s240
      %p242 = scmp.eq.s32.totalorder %s28, 0
      %p243 = por %p241, %p242
      %s245 = sadd.s32 %s244, 1
      %p248 = scmp.eq.s32.totalorder %s22, 7
      %p249 = scmp.ne.s32.totalorder %s244, %s246
      %p250 = scmp.eq.s32.totalorder %s22, 0
      %p251 = por %p249, %p250
      %p252 = scmp.ne.s32.totalorder %s244, %s246
      %p253 = scmp.eq.s32.totalorder %s27, 7
      %p254 = por %p252, %p253
      %p255 = scmp.ne.s32.totalorder %s246, %s247
      %p256 = scmp.eq.s32.totalorder %s27, 0
      %p257 = por %p255, %p256
      %p258 = scmp.ne.s32.totalorder %s246, %s247
      %p259 = scmp.eq.s32.totalorder %s28, 7
      %p260 = por %p258, %p259
      %p262 = scmp.ne.s32.totalorder %s247, %s261
      %p263 = scmp.eq.s32.totalorder %s28, 0
      %p264 = por %p262, %p263
      %s266 = sadd.s32 %s265, 1
      %p269 = scmp.eq.s32.totalorder %s22, 7
      %p270 = scmp.ne.s32.totalorder %s265, %s267
      %p271 = scmp.eq.s32.totalorder %s22, 0
      %p272 = por %p270, %p271
      %p273 = scmp.ne.s32.totalorder %s265, %s267
      %p274 = scmp.eq.s32.totalorder %s27, 7
      %p275 = por %p273, %p274
      %p276 = scmp.ne.s32.totalorder %s267, %s268
      %p277 = scmp.eq.s32.totalorder %s27, 0
      %p278 = por %p276, %p277
      %p279 = scmp.ne.s32.totalorder %s267, %s268
      %p280 = scmp.eq.s32.totalorder %s28, 7
      %p281 = por %p279, %p280
      %p283 = scmp.ne.s32.totalorder %s268, %s282
      %p284 = scmp.eq.s32.totalorder %s28, 0
      %p285 = por %p283, %p284
      %s287 = sadd.s32 %s286, 1
      %p290 = scmp.eq.s32.totalorder %s22, 7
      %p291 = scmp.ne.s32.totalorder %s286, %s288
      %p292 = scmp.eq.s32.totalorder %s22, 0
      %p293 = por %p291, %p292
      %p294 = scmp.ne.s32.totalorder %s286, %s288
      %p295 = scmp.eq.s32.totalorder %s27, 7
      %p296 = por %p294, %p295
      %p297 = scmp.ne.s32.totalorder %s288, %s289
      %p298 = scmp.eq.s32.totalorder %s27, 0
      %p299 = por %p297, %p298
      %p300 = scmp.ne.s32.totalorder %s288, %s289
      %p301 = scmp.eq.s32.totalorder %s28, 7
      %p302 = por %p300, %p301
      %p304 = scmp.ne.s32.totalorder %s289, %s303
      %p305 = scmp.eq.s32.totalorder %s28, 0
      %p306 = por %p304, %p305
      %s308 = sadd.s32 %s307, 1
      %p311 = scmp.eq.s32.totalorder %s22, 7
      %p312 = scmp.ne.s32.totalorder %s307, %s309
      %p313 = scmp.eq.s32.totalorder %s22, 0
      %p314 = por %p312, %p313
      %p315 = scmp.ne.s32.totalorder %s307, %s309
      %p316 = scmp.eq.s32.totalorder %s27, 7
      %p317 = por %p315, %p316
      %p318 = scmp.ne.s32.totalorder %s309, %s310
      %p319 = scmp.eq.s32.totalorder %s27, 0
      %p320 = por %p318, %p319
      %p321 = scmp.ne.s32.totalorder %s309, %s310
      %p322 = scmp.eq.s32.totalorder %s28, 7
      %p323 = por %p321, %p322
      %p325 = scmp.ne.s32.totalorder %s310, %s324
      %p326 = scmp.eq.s32.totalorder %s28, 0
      %p327 = por %p325, %p326
      %s329 = sadd.s32 %s328, 1
      %p332 = scmp.eq.s32.totalorder %s22, 7
      %p333 = scmp.ne.s32.totalorder %s328, %s330
      %p334 = scmp.eq.s32.totalorder %s22, 0
      %p335 = por %p333, %p334
      %p336 = scmp.ne.s32.totalorder %s328, %s330
      %p337 = scmp.eq.s32.totalorder %s27, 7
      %p338 = por %p336, %p337
      %p339 = scmp.ne.s32.totalorder %s330, %s331
      %p340 = scmp.eq.s32.totalorder %s27, 0
      %p341 = por %p339, %p340
      %p342 = scmp.ne.s32.totalorder %s330, %s331
      %p343 = scmp.eq.s32.totalorder %s28, 7
      %p344 = por %p342, %p343
      %p346 = scmp.ne.s32.totalorder %s331, %s345
      %p347 = scmp.eq.s32.totalorder %s28, 0
      %p348 = por %p346, %p347
      %s350 = sadd.s32 %s349, 1
      %p353 = scmp.eq.s32.totalorder %s22, 7
      %p354 = scmp.ne.s32.totalorder %s349, %s351
      %p355 = scmp.eq.s32.totalorder %s22, 0
      %p356 = por %p354, %p355
      %p357 = scmp.ne.s32.totalorder %s349, %s351
      %p358 = scmp.eq.s32.totalorder %s27, 7
      %p359 = por %p357, %p358
      %p360 = scmp.ne.s32.totalorder %s351, %s352
      %p361 = scmp.eq.s32.totalorder %s27, 0
      %p362 = por %p360, %p361
      %p363 = scmp.ne.s32.totalorder %s351, %s352
      %p364 = scmp.eq.s32.totalorder %s28, 7
      %p365 = por %p363, %p364
      %p367 = scmp.ne.s32.totalorder %s352, %s366
      %p368 = scmp.eq.s32.totalorder %s28, 0
      %p369 = por %p367, %p368
      %s371 = sadd.s32 %s370, 1
      %p374 = scmp.eq.s32.totalorder %s22, 7
      %p375 = scmp.ne.s32.totalorder %s370, %s372
      %p376 = scmp.eq.s32.totalorder %s22, 0
      %p377 = por %p375, %p376
      %p378 = scmp.ne.s32.totalorder %s370, %s372
      %p379 = scmp.eq.s32.totalorder %s27, 7
      %p380 = por %p378, %p379
      %p381 = scmp.ne.s32.totalorder %s372, %s373
      %p382 = scmp.eq.s32.totalorder %s27, 0
      %p383 = por %p381, %p382
      %p384 = scmp.ne.s32.totalorder %s372, %s373
      %p385 = scmp.eq.s32.totalorder %s28, 7
      %p386 = por %p384, %p385
      %p388 = scmp.ne.s32.totalorder %s373, %s387
      %p389 = scmp.eq.s32.totalorder %s28, 0
      %p390 = por %p388, %p389
      %p391 = scmp.le.s32.totalorder 1, %s22
      %p392 = scmp.lt.s32.totalorder %s22, 9
      %p393 = pnand %p391, %p392
      %p394 = pneg %p393
      // Predicated region
      $region9: #{context_infer_forward.1} parent=5 // pred_check
        _
      $region10: #{context_infer_forward.1} parent=5 // pred_check_branch
        %396 = sbr.rel (%p393) target = $region12
      $region11: #{context_infer_forward.1} parent=5 // pred_region
        %s397 = ssub.s32 %s22, 1
        // Predicated region
        $region13: #{context_infer_forward.1} parent=11 // pred_check
          %p398 = pneg %p173
        $region14: #{context_infer_forward.1} parent=11 // pred_check_branch
          %400 = sbr.rel (%p398) target = $region16
        $region15: #{context_infer_forward.1} parent=11 // pred_region
          _
        $region16: #{context_infer_forward.1} parent=11 // pred_fallthru
          _
        // Predicated region
        $region17: #{context_infer_forward.1} parent=11 // pred_check
          %p401 = pneg %p194
        $region18: #{context_infer_forward.1} parent=11 // pred_check_branch
          %403 = sbr.rel (%p401) target = $region20
        $region19: #{context_infer_forward.1} parent=11 // pred_region
          _
        $region20: #{context_infer_forward.1} parent=11 // pred_fallthru
          _
        // Predicated region
        $region21: #{context_infer_forward.1} parent=11 // pred_check
          %p404 = pneg %p215
        $region22: #{context_infer_forward.1} parent=11 // pred_check_branch
          %406 = sbr.rel (%p404) target = $region24
        $region23: #{context_infer_forward.1} parent=11 // pred_region
          _
        $region24: #{context_infer_forward.1} parent=11 // pred_fallthru
          _
        // Predicated region
        $region25: #{context_infer_forward.1} parent=11 // pred_check
          %p407 = pneg %p236
        $region26: #{context_infer_forward.1} parent=11 // pred_check_branch
          %409 = sbr.rel (%p407) target = $region28
        $region27: #{context_infer_forward.1} parent=11 // pred_region
          _
        $region28: #{context_infer_forward.1} parent=11 // pred_fallthru
          _
        // Predicated region
        $region29: #{context_infer_forward.1} parent=11 // pred_check
          %p410 = pneg %p257
        $region30: #{context_infer_forward.1} parent=11 // pred_check_branch
          %412 = sbr.rel (%p410) target = $region32
        $region31: #{context_infer_forward.1} parent=11 // pred_region
          _
        $region32: #{context_infer_forward.1} parent=11 // pred_fallthru
          _
        // Predicated region
        $region33: #{context_infer_forward.1} parent=11 // pred_check
          %p413 = pneg %p278
        $region34: #{context_infer_forward.1} parent=11 // pred_check_branch
          %415 = sbr.rel (%p413) target = $region36
        $region35: #{context_infer_forward.1} parent=11 // pred_region
          _
        $region36: #{context_infer_forward.1} parent=11 // pred_fallthru
          _
        // Predicated region
        $region37: #{context_infer_forward.1} parent=11 // pred_check
          %p416 = pneg %p299
        $region38: #{context_infer_forward.1} parent=11 // pred_check_branch
          %418 = sbr.rel (%p416) target = $region40
        $region39: #{context_infer_forward.1} parent=11 // pred_region
          _
        $region40: #{context_infer_forward.1} parent=11 // pred_fallthru
          _
        // Predicated region
        $region41: #{context_infer_forward.1} parent=11 // pred_check
          %p419 = pneg %p320
        $region42: #{context_infer_forward.1} parent=11 // pred_check_branch
          %421 = sbr.rel (%p419) target = $region44
        $region43: #{context_infer_forward.1} parent=11 // pred_region
          _
        $region44: #{context_infer_forward.1} parent=11 // pred_fallthru
          _
        // Predicated region
        $region45: #{context_infer_forward.1} parent=11 // pred_check
          %p422 = pneg %p341
        $region46: #{context_infer_forward.1} parent=11 // pred_check_branch
          %424 = sbr.rel (%p422) target = $region48
        $region47: #{context_infer_forward.1} parent=11 // pred_region
          _
        $region48: #{context_infer_forward.1} parent=11 // pred_fallthru
          _
        // Predicated region
        $region49: #{context_infer_forward.1} parent=11 // pred_check
          %p425 = pneg %p362
        $region50: #{context_infer_forward.1} parent=11 // pred_check_branch
          %427 = sbr.rel (%p425) target = $region52
        $region51: #{context_infer_forward.1} parent=11 // pred_region
          _
        $region52: #{context_infer_forward.1} parent=11 // pred_fallthru
          _
      $region12: #{context_infer_forward.1} parent=5 // pred_fallthru
        _
      %p428 = scmp.lt.s32.totalorder %s22, 8
      // Predicated region
      $region53: #{context_infer_forward.1} parent=5 // pred_check
        %p429 = pneg %p428
      $region54: #{context_infer_forward.1} parent=5 // pred_check_branch
        %431 = sbr.rel (%p429) target = $region56
      $region55: #{context_infer_forward.1} parent=5 // pred_region
        // Predicated region
        $region57: #{context_infer_forward.1} parent=55 // pred_check
          %p432 = pneg %p42
        $region58: #{context_infer_forward.1} parent=55 // pred_check_branch
          %434 = sbr.rel (%p432) target = $region60
        $region59: #{context_infer_forward.1} parent=55 // pred_region
          %p435 = scmp.lt.s32.totalorder %s22, 7
          %s436 = scalar_select %p435, %s22, 7
          %s437 = smul.addr %s436, 2
          %s438 = scalar_lea.vmem %s0, %s437
        $region60: #{context_infer_forward.1} parent=55 // pred_fallthru
          _
        // Predicated region
        $region61: #{context_infer_forward.1} parent=55 // pred_check
          %p439 = pneg %p68
        $region62: #{context_infer_forward.1} parent=55 // pred_check_branch
          %441 = sbr.rel (%p439) target = $region64
        $region63: #{context_infer_forward.1} parent=55 // pred_region
          %p442 = scmp.lt.s32.totalorder %s22, 7
          %s443 = scalar_select %p442, %s22, 7
          %s444 = smul.addr %s443, 2
          %s445 = scalar_lea.vmem %s1, %s444
        $region64: #{context_infer_forward.1} parent=55 // pred_fallthru
          _
        // Predicated region
        $region65: #{context_infer_forward.1} parent=55 // pred_check
          %p446 = pneg %p94
        $region66: #{context_infer_forward.1} parent=55 // pred_check_branch
          %448 = sbr.rel (%p446) target = $region68
        $region67: #{context_infer_forward.1} parent=55 // pred_region
          %p449 = scmp.lt.s32.totalorder %s22, 7
          %s450 = scalar_select %p449, %s22, 7
          %s451 = smul.addr %s450, 2
          %s452 = scalar_lea.vmem %s2, %s451
        $region68: #{context_infer_forward.1} parent=55 // pred_fallthru
          _
        // Predicated region
        $region69: #{context_infer_forward.1} parent=55 // pred_check
          %p453 = pneg %p120
        $region70: #{context_infer_forward.1} parent=55 // pred_check_branch
          %455 = sbr.rel (%p453) target = $region72
        $region71: #{context_infer_forward.1} parent=55 // pred_region
          %p456 = scmp.lt.s32.totalorder %s22, 7
          %s457 = scalar_select %p456, %s22, 7
          %s458 = smul.addr %s457, 2
          %s459 = scalar_lea.vmem %s3, %s458
        $region72: #{context_infer_forward.1} parent=55 // pred_fallthru
          _
        // Predicated region
        $region73: #{context_infer_forward.1} parent=55 // pred_check
          %p460 = pneg %p146
        $region74: #{context_infer_forward.1} parent=55 // pred_check_branch
          %462 = sbr.rel (%p460) target = $region76
        $region75: #{context_infer_forward.1} parent=55 // pred_region
          %p463 = scmp.lt.s32.totalorder %s22, 7
          %s464 = scalar_select %p463, %s22, 7
          %s465 = smul.addr %s464, 2
          %s466 = scalar_lea.vmem %s4, %s465
        $region76: #{context_infer_forward.1} parent=55 // pred_fallthru
          _
      $region56: #{context_infer_forward.1} parent=5 // pred_fallthru
        _
      %p467 = scmp.le.s32.totalorder 1, %s22
      %p468 = scmp.lt.s32.totalorder %s22, 9
      %p469 = pnand %p467, %p468
      %p470 = pneg %p469
      // Predicated region
      $region77: #{context_infer_forward.1} parent=5 // pred_check
        _
      $region78: #{context_infer_forward.1} parent=5 // pred_check_branch
        %472 = sbr.rel (%p469) target = $region80
      $region79: #{context_infer_forward.1} parent=5 // pred_region
        %s473 = ssub.s32 %s22, 1
        %p474 = scmp.lt.s32.totalorder %s27, 7
        %s475 = scalar_select %p474, %s27, 7
        %s476 = smul.addr %s475, 2
        %s477 = scalar_lea.vmem %s0, %s476
        %p478 = pneg %p48
        %p479 = pneg %p45
        %p480 = scmp.lt.s32.totalorder %s27, 7
        %s481 = scalar_select %p480, %s27, 7
        %s482 = smul.addr %s481, 2
        %s483 = scalar_lea.vmem %s1, %s482
        %p484 = pneg %p74
        %p485 = pneg %p71
        %p486 = scmp.lt.s32.totalorder %s27, 7
        %s487 = scalar_select %p486, %s27, 7
        %s488 = smul.addr %s487, 2
        %s489 = scalar_lea.vmem %s2, %s488
        %p490 = pneg %p100
        %p491 = pneg %p97
        %p492 = scmp.lt.s32.totalorder %s27, 7
        %s493 = scalar_select %p492, %s27, 7
        %s494 = smul.addr %s493, 2
        %s495 = scalar_lea.vmem %s3, %s494
        %p496 = pneg %p126
        %p497 = pneg %p123
        %p498 = scmp.lt.s32.totalorder %s27, 7
        %s499 = scalar_select %p498, %s27, 7
        %s500 = smul.addr %s499, 2
        %s501 = scalar_lea.vmem %s4, %s500
        %p502 = pneg %p152
        %p503 = pneg %p149
        %p504 = pneg %p173
        %p505 = pneg %p170
        %p506 = pneg %p194
        %p507 = pneg %p191
        %p508 = pneg %p215
        %p509 = pneg %p212
        %p510 = pneg %p236
        %p511 = pneg %p233
        %p512 = pneg %p257
        %p513 = pneg %p254
        %p514 = pneg %p278
        %p515 = pneg %p275
        %p516 = pneg %p299
        %p517 = pneg %p296
        %p518 = pneg %p320
        %p519 = pneg %p317
        %p520 = pneg %p341
        %p521 = pneg %p338
        %p522 = pneg %p362
        %p523 = pneg %p359
        %p524 = pneg %p383
        %p525 = pneg %p380
        %p526 = scmp.lt.s32.totalorder %s27, 7
        %s527 = scalar_select %p526, %s27, 7
        %s528 = smul.addr %s527, 2
        %s529 = scalar_lea.vmem %s0, %s528
        %p530 = scmp.lt.s32.totalorder %s27, 7
        %s531 = scalar_select %p530, %s27, 7
        %s532 = smul.addr %s531, 2
        %s533 = scalar_lea.vmem %s1, %s532
        %p534 = scmp.lt.s32.totalorder %s27, 7
        %s535 = scalar_select %p534, %s27, 7
        %s536 = smul.addr %s535, 2
        %s537 = scalar_lea.vmem %s2, %s536
        %p538 = scmp.lt.s32.totalorder %s27, 7
        %s539 = scalar_select %p538, %s27, 7
        %s540 = smul.addr %s539, 2
        %s541 = scalar_lea.vmem %s3, %s540
        %p542 = scmp.lt.s32.totalorder %s27, 7
        %s543 = scalar_select %p542, %s27, 7
        %s544 = smul.addr %s543, 2
        %s545 = scalar_lea.vmem %s4, %s544
        %p546 = scmp.eq.s32.totalorder %s27, 0
        // Predicated region
        $region81: #{context_infer_forward.1} parent=79 // pred_check
          %p547 = pneg %p546
        $region82: #{context_infer_forward.1} parent=79 // pred_check_branch
          %549 = sbr.rel (%p547) target = $region84
        $region83: #{context_infer_forward.1} parent=79 // pred_region
          %vm550 = vcmask 58368
          %551 = vst.msk [vmem:[#allocation2] sm:$0x3] %vm550, 0.0
        $region84: #{context_infer_forward.1} parent=79 // pred_fallthru
          _
        %v552 = vld [vmem:[%s529] sm:$0x3]
        %v553 = vld [vmem:[%s533] sm:$0x3]
        %v554 = vld [vmem:[%s537] sm:$0x3]
        %v555 = vld [vmem:[%s541] sm:$0x3]
        %v556 = vld [vmem:[%s545] sm:$0x3]
        %v557 = vld [vmem:[%s5] sm:$0xff]
        %v558 = vld [vmem:[%s5 + $0x8] sm:$0xff]
        %v559 = vld [vmem:[%s6] sm:$0xf]
        %vm560 = vcmask 31744
        %v562 = vsel %vm560, %v553, 0
        %vm564 = vcmask 1043456
        %v566 = vsel %vm564, %v559, 0
        %568 = vmatprep.subr.mxu0 0.0
        %569 = vmatpush1.msra.mxu0 %v566
        %570 = vmatprep.subr.mxu0 0.0
        %571 = vmatpush1.msra.mxu0 0.0
        %572 = vmatprep.subr.mxu0 0.0
        %573 = vmatpush1.msra.mxu0 0.0
        %574 = vmatprep.subr.mxu0 0.0
        %575 = vmatpush1.msra.mxu0 0.0
        %576 = vmatprep.subr.mxu0 0.0
        %577 = vmatpush1.msra.mxu0 0.0
        %578 = vmatprep.subr.mxu0 0.0
        %579 = vmatpush1.msra.mxu0 0.0
        %580 = vmatprep.subr.mxu0 0.0
        %581 = vmatpush1.msra.mxu0 0.0
        %582 = vmatprep.subr.mxu0 0.0
        %583 = vmatpush1.msra.mxu0 0.0
        %584 = vmatprep.subr.mxu0 0.0
        %585 = vmatpush1.msra.mxu0 0.0
        %586 = vmatprep.subr.mxu0 0.0
        %587 = vmatpush1.msra.mxu0 0.0
        %588 = vmatprep.subr.mxu0 0.0
        %589 = vmatpush1.msra.mxu0 0.0
        %590 = vmatprep.subr.mxu0 0.0
        %591 = vmatpush1.msra.mxu0 0.0
        %592 = vmatprep.subr.mxu0 0.0
        %593 = vmatpush1.msra.mxu0 0.0
        %594 = vmatprep.subr.mxu0 0.0
        %595 = vmatpush1.msra.mxu0 0.0
        %596 = vmatprep.subr.mxu0 0.0
        %597 = vmatpush1.msra.mxu0 0.0
        %598 = vmatprep.subr.mxu0 0.0
        %599 = vmatpush1.msra.mxu0 0.0
        %600 = vmatprep.subr.mxu0 0.0
        %601 = vmatpush1.msra.mxu0 0.0
        %602 = vmatprep.subr.mxu0 0.0
        %603 = vmatpush1.msra.mxu0 0.0
        %604 = vmatprep.subr.mxu0 0.0
        %605 = vmatpush1.msra.mxu0 0.0
        %606 = vmatprep.subr.mxu0 0.0
        %607 = vmatpush1.msra.mxu0 0.0
        %608 = vmatprep.subr.mxu0 0.0
        %609 = vmatpush1.msra.mxu0 0.0
        %610 = vmatprep.subr.mxu0 0.0
        %611 = vmatpush1.msra.mxu0 0.0
        %612 = vmatprep.subr.mxu0 0.0
        %613 = vmatpush1.msra.mxu0 0.0
        %614 = vmatprep.subr.mxu0 0.0
        %615 = vmatpush1.msra.mxu0 0.0
        %616 = vmatprep.subr.mxu0 0.0
        %617 = vmatpush1.msra.mxu0 0.0
        %618 = vmatprep.subr.mxu0 0.0
        %619 = vmatpush1.msra.mxu0 0.0
        %620 = vmatprep.subr.mxu0 0.0
        %621 = vmatpush1.msra.mxu0 0.0
        %622 = vmatprep.subr.mxu0 0.0
        %623 = vmatpush1.msra.mxu0 0.0
        %624 = vmatprep.subr.mxu0 0.0
        %625 = vmatpush1.msra.mxu0 0.0
        %626 = vmatprep.subr.mxu0 0.0
        %627 = vmatpush1.msra.mxu0 0.0
        %628 = vmatprep.subr.mxu0 0.0
        %629 = vmatpush1.msra.mxu0 0.0
        %630 = vmatprep.subr.mxu0 0.0
        %631 = vmatpush1.msra.mxu0 0.0
        %632 = vmatprep.mubr.f32.mxu0 0.0
        %633 = vmatmul.mubr.f32.gmra.mrb[0].mxu0 %v562
        %v634 = vpop.f32.mrb[0].mxu0
        %v635 = vadd.f32 0.0, %v634
        %v636 = vpop.f32.mrb[0].mxu0
        %637 = vdwg.mxu0
        %vm638 = vcmask 130048
        %v640 = vsel %vm638, %v552, 0
        %642 = vmatprep.subr.mxu0 0.0
        %643 = vmatpush1.msra.mxu0 %v557
        %644 = vmatprep.subr.mxu0 0.0
        %645 = vmatpush1.msra.mxu0 %v558
        %646 = vmatprep.subr.mxu0 0.0
        %647 = vmatpush1.msra.mxu0 0.0
        %648 = vmatprep.subr.mxu0 0.0
        %649 = vmatpush1.msra.mxu0 0.0
        %650 = vmatprep.subr.mxu0 0.0
        %651 = vmatpush1.msra.mxu0 0.0
        %652 = vmatprep.subr.mxu0 0.0
        %653 = vmatpush1.msra.mxu0 0.0
        %654 = vmatprep.subr.mxu0 0.0
        %655 = vmatpush1.msra.mxu0 0.0
        %656 = vmatprep.subr.mxu0 0.0
        %657 = vmatpush1.msra.mxu0 0.0
        %658 = vmatprep.subr.mxu0 0.0
        %659 = vmatpush1.msra.mxu0 0.0
        %660 = vmatprep.subr.mxu0 0.0
        %661 = vmatpush1.msra.mxu0 0.0
        %662 = vmatprep.subr.mxu0 0.0
        %663 = vmatpush1.msra.mxu0 0.0
        %664 = vmatprep.subr.mxu0 0.0
        %665 = vmatpush1.msra.mxu0 0.0
        %666 = vmatprep.subr.mxu0 0.0
        %667 = vmatpush1.msra.mxu0 0.0
        %668 = vmatprep.subr.mxu0 0.0
        %669 = vmatpush1.msra.mxu0 0.0
        %670 = vmatprep.subr.mxu0 0.0
        %671 = vmatpush1.msra.mxu0 0.0
        %672 = vmatprep.subr.mxu0 0.0
        %673 = vmatpush1.msra.mxu0 0.0
        %674 = vmatprep.subr.mxu0 0.0
        %675 = vmatpush1.msra.mxu0 0.0
        %676 = vmatprep.subr.mxu0 0.0
        %677 = vmatpush1.msra.mxu0 0.0
        %678 = vmatprep.subr.mxu0 0.0
        %679 = vmatpush1.msra.mxu0 0.0
        %680 = vmatprep.subr.mxu0 0.0
        %681 = vmatpush1.msra.mxu0 0.0
        %682 = vmatprep.subr.mxu0 0.0
        %683 = vmatpush1.msra.mxu0 0.0
        %684 = vmatprep.subr.mxu0 0.0
        %685 = vmatpush1.msra.mxu0 0.0
        %686 = vmatprep.subr.mxu0 0.0
        %687 = vmatpush1.msra.mxu0 0.0
        %688 = vmatprep.subr.mxu0 0.0
        %689 = vmatpush1.msra.mxu0 0.0
        %690 = vmatprep.subr.mxu0 0.0
        %691 = vmatpush1.msra.mxu0 0.0
        %692 = vmatprep.subr.mxu0 0.0
        %693 = vmatpush1.msra.mxu0 0.0
        %694 = vmatprep.subr.mxu0 0.0
        %695 = vmatpush1.msra.mxu0 0.0
        %696 = vmatprep.subr.mxu0 0.0
        %697 = vmatpush1.msra.mxu0 0.0
        %698 = vmatprep.subr.mxu0 0.0
        %699 = vmatpush1.msra.mxu0 0.0
        %700 = vmatprep.subr.mxu0 0.0
        %701 = vmatpush1.msra.mxu0 0.0
        %702 = vmatprep.subr.mxu0 0.0
        %703 = vmatpush1.msra.mxu0 0.0
        %704 = vmatprep.subr.mxu0 0.0
        %705 = vmatpush1.msra.mxu0 0.0
        %706 = vmatprep.mubr.f32.mxu0 0.0
        %707 = vmatmul.mubr.f32.gmra.mrb[0].mxu0 %v640
        %v708 = vpop.f32.mrb[0].mxu0
        %v709 = vadd.f32 %v635, %v708
        %v710 = vpop.f32.mrb[0].mxu0
        %711 = vdwg.mxu0
        %v712 = vld [vmem:[%s8] sm:$0xff]
        %v713 = vld [vmem:[%s8 + $0x8] sm:$0xff]
        %v715 = vsel %vm638, %v555, 0
        %717 = vmatprep.subr.mxu0 0.0
        %718 = vmatpush1.msra.mxu0 %v712
        %719 = vmatprep.subr.mxu0 0.0
        %720 = vmatpush1.msra.mxu0 %v713
        %721 = vmatprep.subr.mxu0 0.0
        %722 = vmatpush1.msra.mxu0 0.0
        %723 = vmatprep.subr.mxu0 0.0
        %724 = vmatpush1.msra.mxu0 0.0
        %725 = vmatprep.subr.mxu0 0.0
        %726 = vmatpush1.msra.mxu0 0.0
        %727 = vmatprep.subr.mxu0 0.0
        %728 = vmatpush1.msra.mxu0 0.0
        %729 = vmatprep.subr.mxu0 0.0
        %730 = vmatpush1.msra.mxu0 0.0
        %731 = vmatprep.subr.mxu0 0.0
        %732 = vmatpush1.msra.mxu0 0.0
        %733 = vmatprep.subr.mxu0 0.0
        %734 = vmatpush1.msra.mxu0 0.0
        %735 = vmatprep.subr.mxu0 0.0
        %736 = vmatpush1.msra.mxu0 0.0
        %737 = vmatprep.subr.mxu0 0.0
        %738 = vmatpush1.msra.mxu0 0.0
        %739 = vmatprep.subr.mxu0 0.0
        %740 = vmatpush1.msra.mxu0 0.0
        %741 = vmatprep.subr.mxu0 0.0
        %742 = vmatpush1.msra.mxu0 0.0
        %743 = vmatprep.subr.mxu0 0.0
        %744 = vmatpush1.msra.mxu0 0.0
        %745 = vmatprep.subr.mxu0 0.0
        %746 = vmatpush1.msra.mxu0 0.0
        %747 = vmatprep.subr.mxu0 0.0
        %748 = vmatpush1.msra.mxu0 0.0
        %749 = vmatprep.subr.mxu0 0.0
        %750 = vmatpush1.msra.mxu0 0.0
        %751 = vmatprep.subr.mxu0 0.0
        %752 = vmatpush1.msra.mxu0 0.0
        %753 = vmatprep.subr.mxu0 0.0
        %754 = vmatpush1.msra.mxu0 0.0
        %755 = vmatprep.subr.mxu0 0.0
        %756 = vmatpush1.msra.mxu0 0.0
        %757 = vmatprep.subr.mxu0 0.0
        %758 = vmatpush1.msra.mxu0 0.0
        %759 = vmatprep.subr.mxu0 0.0
        %760 = vmatpush1.msra.mxu0 0.0
        %761 = vmatprep.subr.mxu0 0.0
        %762 = vmatpush1.msra.mxu0 0.0
        %763 = vmatprep.subr.mxu0 0.0
        %764 = vmatpush1.msra.mxu0 0.0
        %765 = vmatprep.subr.mxu0 0.0
        %766 = vmatpush1.msra.mxu0 0.0
        %767 = vmatprep.subr.mxu0 0.0
        %768 = vmatpush1.msra.mxu0 0.0
        %769 = vmatprep.subr.mxu0 0.0
        %770 = vmatpush1.msra.mxu0 0.0
        %771 = vmatprep.subr.mxu0 0.0
        %772 = vmatpush1.msra.mxu0 0.0
        %773 = vmatprep.subr.mxu0 0.0
        %774 = vmatpush1.msra.mxu0 0.0
        %775 = vmatprep.subr.mxu0 0.0
        %776 = vmatpush1.msra.mxu0 0.0
        %777 = vmatprep.subr.mxu0 0.0
        %778 = vmatpush1.msra.mxu0 0.0
        %779 = vmatprep.subr.mxu0 0.0
        %780 = vmatpush1.msra.mxu0 0.0
        %781 = vmatprep.mubr.f32.mxu0 0.0
        %782 = vmatmul.mubr.f32.gmra.mrb[0].mxu0 %v715
        %v783 = vpop.f32.mrb[0].mxu0
        %v784 = vadd.f32 0.0, %v783
        %v785 = vpop.f32.mrb[0].mxu0
        %786 = vdwg.mxu0
        %v787 = vadd.f32 %v709, %v784
        %v788 = vld [vmem:[%s7] sm:$0x1]
        %790 = vset.pattern.permute.xlu0 0
        %791 = vperm.xlu0 %790, %v554
        %v792 = vpop.permute.xlu0 %791
        %v795 = vlaneseq
        %v796 = vshrl.u32 %v795, 7
        %v797 = vsub.s32 0, %v796
        %v798 = vrot.slane %v788, %v797
        %v800 = vmul.f32 %v792, %v798
        %v801 = vadd.f32 %v787, %v800
        %v802 = vld [vmem:[%s9] sm:$0x1]
        %804 = vset.pattern.permute.xlu0 0
        %805 = vperm.xlu0 %804, %v556
        %v806 = vpop.permute.xlu0 %805
        %v809 = vlaneseq
        %v810 = vshrl.u32 %v809, 7
        %v811 = vsub.s32 0, %v810
        %v812 = vrot.slane %v802, %v811
        %v814 = vmul.f32 %v806, %v812
        %v815 = vadd.f32 %v801, %v814
        %v816 = vld [vmem:[%s10] sm:$0x1]
        %v818 = vlaneseq
        %v819 = vshrl.u32 %v818, 7
        %v820 = vsub.s32 0, %v819
        %v821 = vrot.slane %v816, %v820
        %v823 = vadd.f32 %v815, %v821
        %v824 = vmax.f32 %v823, 0.0
        %v825 = vld [vmem:[%s11] sm:$0xff]
        %v826 = vld [vmem:[%s11 + $0x8] sm:$0xff]
        %v827 = vld [vmem:[%s11 + $0x10] sm:$0xff]
        %v828 = vld [vmem:[%s11 + $0x18] sm:$0xff]
        %v829 = vld [vmem:[%s12] sm:$0x1]
        %v831 = vlaneseq
        %v832 = vshrl.u32 %v831, 7
        %v833 = vsub.s32 0, %v832
        %v834 = vrot.slane %v829, %v833
        %vm836 = vcmask 261120
        %v838 = vsel %vm836, %v824, 0
        %840 = vmatprep.subr.mxu0 0.0
        %841 = vmatpush1.msra.mxu0 %v825
        %842 = vmatprep.subr.mxu0 0.0
        %843 = vmatpush1.msra.mxu0 %v826
        %844 = vmatprep.subr.mxu0 0.0
        %845 = vmatpush1.msra.mxu0 %v827
        %846 = vmatprep.subr.mxu0 0.0
        %847 = vmatpush1.msra.mxu0 %v828
        %848 = vmatprep.subr.mxu0 0.0
        %849 = vmatpush1.msra.mxu0 0.0
        %850 = vmatprep.subr.mxu0 0.0
        %851 = vmatpush1.msra.mxu0 0.0
        %852 = vmatprep.subr.mxu0 0.0
        %853 = vmatpush1.msra.mxu0 0.0
        %854 = vmatprep.subr.mxu0 0.0
        %855 = vmatpush1.msra.mxu0 0.0
        %856 = vmatprep.subr.mxu0 0.0
        %857 = vmatpush1.msra.mxu0 0.0
        %858 = vmatprep.subr.mxu0 0.0
        %859 = vmatpush1.msra.mxu0 0.0
        %860 = vmatprep.subr.mxu0 0.0
        %861 = vmatpush1.msra.mxu0 0.0
        %862 = vmatprep.subr.mxu0 0.0
        %863 = vmatpush1.msra.mxu0 0.0
        %864 = vmatprep.subr.mxu0 0.0
        %865 = vmatpush1.msra.mxu0 0.0
        %866 = vmatprep.subr.mxu0 0.0
        %867 = vmatpush1.msra.mxu0 0.0
        %868 = vmatprep.subr.mxu0 0.0
        %869 = vmatpush1.msra.mxu0 0.0
        %870 = vmatprep.subr.mxu0 0.0
        %871 = vmatpush1.msra.mxu0 0.0
        %872 = vmatprep.subr.mxu0 0.0
        %873 = vmatpush1.msra.mxu0 0.0
        %874 = vmatprep.subr.mxu0 0.0
        %875 = vmatpush1.msra.mxu0 0.0
        %876 = vmatprep.subr.mxu0 0.0
        %877 = vmatpush1.msra.mxu0 0.0
        %878 = vmatprep.subr.mxu0 0.0
        %879 = vmatpush1.msra.mxu0 0.0
        %880 = vmatprep.subr.mxu0 0.0
        %881 = vmatpush1.msra.mxu0 0.0
        %882 = vmatprep.subr.mxu0 0.0
        %883 = vmatpush1.msra.mxu0 0.0
        %884 = vmatprep.subr.mxu0 0.0
        %885 = vmatpush1.msra.mxu0 0.0
        %886 = vmatprep.subr.mxu0 0.0
        %887 = vmatpush1.msra.mxu0 0.0
        %888 = vmatprep.subr.mxu0 0.0
        %889 = vmatpush1.msra.mxu0 0.0
        %890 = vmatprep.subr.mxu0 0.0
        %891 = vmatpush1.msra.mxu0 0.0
        %892 = vmatprep.subr.mxu0 0.0
        %893 = vmatpush1.msra.mxu0 0.0
        %894 = vmatprep.subr.mxu0 0.0
        %895 = vmatpush1.msra.mxu0 0.0
        %896 = vmatprep.subr.mxu0 0.0
        %897 = vmatpush1.msra.mxu0 0.0
        %898 = vmatprep.subr.mxu0 0.0
        %899 = vmatpush1.msra.mxu0 0.0
        %900 = vmatprep.subr.mxu0 0.0
        %901 = vmatpush1.msra.mxu0 0.0
        %902 = vmatprep.subr.mxu0 0.0
        %903 = vmatpush1.msra.mxu0 0.0
        %904 = vmatprep.mubr.f32.mxu0 0.0
        %905 = vmatmul.mubr.f32.gmra.mrb[0].mxu0 %v838
        %v906 = vpop.f32.mrb[0].mxu0
        %v907 = vadd.f32 %v834, %v906
        %v908 = vpop.f32.mrb[0].mxu0
        %909 = vdwg.mxu0
        %v910 = vmax.f32 %v907, 0.0
        %v911 = vld [vmem:[%s13] sm:$0xff]
        %v912 = vld [vmem:[%s13 + $0x8] sm:$0xff]
        %v913 = vld [vmem:[%s13 + $0x10] sm:$0xff]
        %v914 = vld [vmem:[%s13 + $0x18] sm:$0xff]
        %v915 = vld [vmem:[%s14] sm:$0x1]
        %v917 = vlaneseq
        %v918 = vshrl.u32 %v917, 7
        %v919 = vsub.s32 0, %v918
        %v920 = vrot.slane %v915, %v919
        %v923 = vsel %vm836, %v910, 0
        %925 = vmatprep.subr.mxu0 0.0
        %926 = vmatpush1.msra.mxu0 %v911
        %927 = vmatprep.subr.mxu0 0.0
        %928 = vmatpush1.msra.mxu0 %v912
        %929 = vmatprep.subr.mxu0 0.0
        %930 = vmatpush1.msra.mxu0 %v913
        %931 = vmatprep.subr.mxu0 0.0
        %932 = vmatpush1.msra.mxu0 %v914
        %933 = vmatprep.subr.mxu0 0.0
        %934 = vmatpush1.msra.mxu0 0.0
        %935 = vmatprep.subr.mxu0 0.0
        %936 = vmatpush1.msra.mxu0 0.0
        %937 = vmatprep.subr.mxu0 0.0
        %938 = vmatpush1.msra.mxu0 0.0
        %939 = vmatprep.subr.mxu0 0.0
        %940 = vmatpush1.msra.mxu0 0.0
        %941 = vmatprep.subr.mxu0 0.0
        %942 = vmatpush1.msra.mxu0 0.0
        %943 = vmatprep.subr.mxu0 0.0
        %944 = vmatpush1.msra.mxu0 0.0
        %945 = vmatprep.subr.mxu0 0.0
        %946 = vmatpush1.msra.mxu0 0.0
        %947 = vmatprep.subr.mxu0 0.0
        %948 = vmatpush1.msra.mxu0 0.0
        %949 = vmatprep.subr.mxu0 0.0
        %950 = vmatpush1.msra.mxu0 0.0
        %951 = vmatprep.subr.mxu0 0.0
        %952 = vmatpush1.msra.mxu0 0.0
        %953 = vmatprep.subr.mxu0 0.0
        %954 = vmatpush1.msra.mxu0 0.0
        %955 = vmatprep.subr.mxu0 0.0
        %956 = vmatpush1.msra.mxu0 0.0
        %957 = vmatprep.subr.mxu0 0.0
        %958 = vmatpush1.msra.mxu0 0.0
        %959 = vmatprep.subr.mxu0 0.0
        %960 = vmatpush1.msra.mxu0 0.0
        %961 = vmatprep.subr.mxu0 0.0
        %962 = vmatpush1.msra.mxu0 0.0
        %963 = vmatprep.subr.mxu0 0.0
        %964 = vmatpush1.msra.mxu0 0.0
        %965 = vmatprep.subr.mxu0 0.0
        %966 = vmatpush1.msra.mxu0 0.0
        %967 = vmatprep.subr.mxu0 0.0
        %968 = vmatpush1.msra.mxu0 0.0
        %969 = vmatprep.subr.mxu0 0.0
        %970 = vmatpush1.msra.mxu0 0.0
        %971 = vmatprep.subr.mxu0 0.0
        %972 = vmatpush1.msra.mxu0 0.0
        %973 = vmatprep.subr.mxu0 0.0
        %974 = vmatpush1.msra.mxu0 0.0
        %975 = vmatprep.subr.mxu0 0.0
        %976 = vmatpush1.msra.mxu0 0.0
        %977 = vmatprep.subr.mxu0 0.0
        %978 = vmatpush1.msra.mxu0 0.0
        %979 = vmatprep.subr.mxu0 0.0
        %980 = vmatpush1.msra.mxu0 0.0
        %981 = vmatprep.subr.mxu0 0.0
        %982 = vmatpush1.msra.mxu0 0.0
        %983 = vmatprep.subr.mxu0 0.0
        %984 = vmatpush1.msra.mxu0 0.0
        %985 = vmatprep.subr.mxu0 0.0
        %986 = vmatpush1.msra.mxu0 0.0
        %987 = vmatprep.subr.mxu0 0.0
        %988 = vmatpush1.msra.mxu0 0.0
        %989 = vmatprep.mubr.f32.mxu0 0.0
        %990 = vmatmul.mubr.f32.gmra.mrb[0].mxu0 %v923
        %v991 = vpop.f32.mrb[0].mxu0
        %v992 = vadd.f32 %v920, %v991
        %v993 = vpop.f32.mrb[0].mxu0
        %994 = vdwg.mxu0
        %v995 = vld [vmem:[#allocation2] sm:$0x3]
        %v996 = vadd.f32 %v995, %v992
        %vm997 = vcmask 58368
        %998 = vst.msk [vmem:[#allocation2] sm:$0x3] %vm997, %v996
        %p999 = scmp.eq.s32.totalorder %s27, 7
        // Predicated region
        $region85: #{context_infer_forward.1} parent=79 // pred_check
          %p1000 = pneg %p999
        $region86: #{context_infer_forward.1} parent=79 // pred_check_branch
          %1002 = sbr.rel (%p1000) target = $region88
        $region87: #{context_infer_forward.1} parent=79 // pred_region
          %v1003 = vld [vmem:[#allocation2] sm:$0x3]
          %v1004 = vmul.f32 %v1003, 0.125
          %1005 = vst.msk [vmem:[#allocation3] sm:$0x3] %vm997, %v1004
        $region88: #{context_infer_forward.1} parent=79 // pred_fallthru
          _
        // Predicated region
        $region89: #{context_infer_forward.1} parent=79 // pred_check
          %p1006 = pneg %p380
        $region90: #{context_infer_forward.1} parent=79 // pred_check_branch
          %1008 = sbr.rel (%p1006) target = $region92
        $region91: #{context_infer_forward.1} parent=79 // pred_region
          %s1010 = ssub.s32 32, 32
          %1011 = vsyncadd [#allocation4], %s1010
          %s1013 = sshll.u32 [#allocation3], 4
          %s1014 = int_to_ptr.vmem [resolvable:$true] %s1013
          %1016 = dma.vmem_to_hbm [thread:$0]  %s1014, 32, %s15, [#allocation4]
        $region92: #{context_infer_forward.1} parent=79 // pred_fallthru
          _
        // Predicated region
        $region93: #{context_infer_forward.1} parent=79 // pred_check
          %p1017 = pneg %p380
        $region94: #{context_infer_forward.1} parent=79 // pred_check_branch
          %1019 = sbr.rel (%p1017) target = $region96
        $region95: #{context_infer_forward.1} parent=79 // pred_region
          %1020 = dma.done [#allocation4], 32
        $region96: #{context_infer_forward.1} parent=79 // pred_fallthru
          _
      $region80: #{context_infer_forward.1} parent=5 // pred_fallthru
        _
      %p1021 = scmp.le.s32.totalorder 2, %s22
      // Predicated region
      $region97: #{context_infer_forward.1} parent=5 // pred_check
        %p1022 = pneg %p1021
      $region98: #{context_infer_forward.1} parent=5 // pred_check_branch
        %1024 = sbr.rel (%p1022) target = $region100
      $region99: #{context_infer_forward.1} parent=5 // pred_region
        %s1025 = ssub.s32 %s22, 2
      $region100: #{context_infer_forward.1} parent=5 // pred_fallthru
        _
    $region6: #{context_infer_forward.1} parent=1 // loop_footer
      %s26 = sadd.s32 1, %s22
    $region7: #{context_infer_forward.1} parent=1 // loop_footer_branch
      %21 = sbr.rel target = $region3
    $region8: #{context_infer_forward.1} parent=1 // loop_exit
      _
    %1026 = vsyncpa [#allocation4], 1
    %s1027 = scalar_lea.sflag [#allocation4], 1
    %1028 = vsyncpa %s1027, 1

</llo_original>
